<compile_context>
chip_gen: v5e
topology: v5e:2x2
jax: 0.10.0
libtpu: 0.0.40
codegen_flags: <defaults>
</compile_context>

<pallas_src>
import functools
import math

import jax
import jax.numpy as jnp
from jax.experimental import pallas as pl
from jax.experimental.pallas import tpu as pltpu

EPS = 1e-5          # nn.GroupNorm default eps
NUM_GROUPS = 32     # nn.GroupNorm(32, channels)


# --------------------------------------------------------------------------- #
# Kernel 1: GroupNorm statistics (per batch element, accumulated over HW tiles)
# --------------------------------------------------------------------------- #
def _gn_stats_kernel(x_ref, gavg_ref, stats_ref, sum_sc, ssq_sc, *, inv_hw, eps):
    si = pl.program_id(1)

    @pl.when(si == 0)
    def _():
        sum_sc[...] = jnp.zeros_like(sum_sc)
        ssq_sc[...] = jnp.zeros_like(ssq_sc)

    x = x_ref[...].astype(jnp.float32)                      # [ts, Cp]
    sum_sc[...] += jnp.sum(x, axis=0, keepdims=True)
    ssq_sc[...] += jnp.sum(x * x, axis=0, keepdims=True)

    @pl.when(si == pl.num_programs(1) - 1)
    def _():
        mu_c = sum_sc[...] * inv_hw                         # per-channel E[x]
        msq_c = ssq_sc[...] * inv_hw                        # per-channel E[x^2]
        # pool within groups via the (1/group_size) block-diagonal averaging matrix (MXU)
        g_mu = jnp.dot(mu_c, gavg_ref[...], preferred_element_type=jnp.float32)
        g_msq = jnp.dot(msq_c, gavg_ref[...], preferred_element_type=jnp.float32)
        # NOTE: one-pass E[x^2] - E[x]^2 in f32; adequate at unit-scale activations.
        g_var = jnp.maximum(g_msq - g_mu * g_mu, 0.0)
        stats_ref[0:1, :] = g_mu
        stats_ref[1:2, :] = jax.lax.rsqrt(g_var + eps)


# --------------------------------------------------------------------------- #
# Kernel 2: flash-style attention + output projection + residual
# --------------------------------------------------------------------------- #
def _attn_kernel(stats_ref, xq_ref, xkv_ref, wq_ref, wk_ref, wv_ref, wp_ref, bias_ref,
                 o_ref, q_sc, m_sc, l_sc, acc_sc):
    ki = pl.program_id(2)
    mu = stats_ref[0:1, :]                                  # [1, Cp]
    rstd = stats_ref[1:2, :]                                # [1, Cp]

    # ---- init + q projection once per (batch, q-tile) ----------------------
    @pl.when(ki == 0)
    def _():
        m_sc[...] = jnp.full_like(m_sc, -jnp.inf)
        l_sc[...] = jnp.zeros_like(l_sc)
        acc_sc[...] = jnp.zeros_like(acc_sc)
        xq_hat = ((xq_ref[...].astype(jnp.float32) - mu) * rstd).astype(jnp.bfloat16)
        # gamma/beta and the 1/sqrt(C) scale are pre-folded into wq / bias row 0
        q = jnp.dot(xq_hat, wq_ref[...],
                    preferred_element_type=jnp.float32) + bias_ref[0:1, :]
        q_sc[...] = q.astype(jnp.bfloat16)

    # ---- k/v projections for this kv tile (bf16 MXU, f32 accumulate) -------
    xkv_hat = ((xkv_ref[...].astype(jnp.float32) - mu) * rstd).astype(jnp.bfloat16)
    k = (jnp.dot(xkv_hat, wk_ref[...], preferred_element_type=jnp.float32)
         + bias_ref[1:2, :]).astype(jnp.bfloat16)
    v = (jnp.dot(xkv_hat, wv_ref[...], preferred_element_type=jnp.float32)
         + bias_ref[2:3, :]).astype(jnp.bfloat16)

    # ---- online-softmax update ----------------------------------------------
    s = jax.lax.dot_general(q_sc[...], k, (((1,), (1,)), ((), ())),
                            preferred_element_type=jnp.float32)        # [tq, tk]
    m_prev = m_sc[...]
    m_new = jnp.maximum(m_prev, jnp.max(s, axis=-1, keepdims=True))
    alpha = jnp.exp(m_prev - m_new)
    p = jnp.exp(s - m_new)
    l_sc[...] = alpha * l_sc[...] + jnp.sum(p, axis=-1, keepdims=True)
    acc_sc[...] = alpha * acc_sc[...] + jnp.dot(p.astype(jnp.bfloat16), v,
                                                preferred_element_type=jnp.float32)
    m_sc[...] = m_new

    # ---- finalize: normalize, project, residual -----------------------------
    @pl.when(ki == pl.num_programs(2) - 1)
    def _():
        out = acc_sc[...] * pl.reciprocal(l_sc[...], approx=True)
        proj = jnp.dot(out.astype(jnp.bfloat16), wp_ref[...],
                       preferred_element_type=jnp.float32) + bias_ref[3:4, :]
        o_ref[...] = (xq_ref[...].astype(jnp.float32) + proj).astype(o_ref.dtype)


# --------------------------------------------------------------------------- #
# Wrapper
# --------------------------------------------------------------------------- #
def _pick_tile(n, cap):
    """Largest divisor of n that is <= cap and sublane-aligned (or n itself)."""
    cap = min(cap, n)
    for t in range(cap, 0, -1):
        if n % t == 0 and (t % 8 == 0 or t == n):
            return t
    return n


def _vmem_limit(est_bytes):
    return int(min(max(est_bytes + (4 << 20), 32 << 20), 96 << 20))


def attention_block(x_nchw, params, *, tq=256, tk=256, ts=1024):
    """x_nchw: [B, C, H, W] float32. Same forward semantics as the PyTorch AttentionBlock.

    tq / tk / ts are the query / key-value / stats spatial tile sizes; halve them for
    v7x's 64 MiB VMEM or v5e's smaller scoped limit if needed at very large shapes.
    """
    b, c, h, w = x_nchw.shape
    assert c % NUM_GROUPS == 0, "GroupNorm(32, C) requires C % 32 == 0"
    hw = h * w
    gs = c // NUM_GROUPS
    scale = c ** (-0.5)

    cp = ((c + 127) // 128) * 128            # lane-dense channel padding
    tq = _pick_tile(hw, tq)
    tk = _pick_tile(hw, tk)
    ts = _pick_tile(hw, ts)

    # ---- layout: NCHW -> [B, HW, Cp] (channels on the lane axis) ------------
    x_seq = jnp.transpose(x_nchw.reshape(b, c, hw), (0, 2, 1))
    x_p = jnp.pad(x_seq, ((0, 0), (0, 0), (0, cp - c)))

    # ---- host-side weight prep: fold GroupNorm affine + attention scale -----
    gamma = params["gamma"].astype(jnp.float32)
    beta = params["beta"].astype(jnp.float32)

    def conv_mat(name):                      # Conv2d [Cout, Cin, 1, 1] -> matmul [Cin, Cout]
        return params[name].reshape(c, c).T.astype(jnp.float32)

    wq_m, wk_m, wv_m, wp_m = (conv_mat(n) for n in ("wq", "wk", "wv", "wp"))
    wq_f = (gamma[:, None] * wq_m) * scale
    bq_f = (beta @ wq_m + params["bq"]) * scale
    wk_f = gamma[:, None] * wk_m
    bk_f = beta @ wk_m + params["bk"]
    wv_f = gamma[:, None] * wv_m
    bv_f = beta @ wv_m + params["bv"]
    bp_f = params["bp"].astype(jnp.float32)

    def pad_w(wm):
        return jnp.pad(wm, ((0, cp - c), (0, cp - c))).astype(jnp.bfloat16)

    def pad_b(bv):
        return jnp.pad(bv.astype(jnp.float32), (0, cp - c))

    wq_b, wk_b, wv_b, wp_b = pad_w(wq_f), pad_w(wk_f), pad_w(wv_f), pad_w(wp_m)
    bias_pack = jnp.stack([pad_b(bq_f), pad_b(bk_f), pad_b(bv_f), pad_b(bp_f)], axis=0)

    # block-diagonal group-averaging matrix over the padded channel layout
    ch = jnp.arange(cp)
    real = ch < c
    same_group = ((ch[:, None] // gs) == (ch[None, :] // gs)) & real[:, None] & real[None, :]
    gavg = same_group.astype(jnp.float32) / gs

    # ---- kernel 1: GroupNorm statistics --------------------------------------
    stats_vmem = _vmem_limit(2 * ts * cp * 4 + cp * cp * 4 + 8 * cp * 4 + 2 * cp * 4)
    stats = pl.pallas_call(
        functools.partial(_gn_stats_kernel, inv_hw=1.0 / hw, eps=EPS),
        out_shape=jax.ShapeDtypeStruct((b, 2, cp), jnp.float32),
        grid=(b, hw // ts),
        in_specs=[
            pl.BlockSpec((None, ts, cp), lambda bi, si: (bi, si, 0)),
            pl.BlockSpec(memory_space=pltpu.MemorySpace.VMEM),          # gavg (single buffer)
        ],
        out_specs=pl.BlockSpec((None, 2, cp), lambda bi, si: (bi, 0, 0)),
        scratch_shapes=[pltpu.VMEM((1, cp), jnp.float32),
                        pltpu.VMEM((1, cp), jnp.float32)],
        compiler_params=pltpu.CompilerParams(
            dimension_semantics=("parallel", "arbitrary"),
            vmem_limit_bytes=stats_vmem),
    )(x_p, gavg)

    # ---- kernel 2: flash-style attention + projection + residual -------------
    attn_vmem = _vmem_limit(
        4 * cp * cp * 2 + 4 * cp * 4 + 2 * 2 * cp * 4            # weights, biases, stats
        + 2 * tq * cp * 4 + 2 * tk * cp * 4 + 2 * tq * cp * 4    # x_q, x_kv, out (dbl-buffered)
        + tq * cp * 2 + tq * cp * 4 + 2 * tq * 128 * 4           # scratch
        + 6 * tq * tk * 4 + 4 * tk * cp * 4)                     # in-kernel temporaries
    out_p = pl.pallas_call(
        _attn_kernel,
        out_shape=jax.ShapeDtypeStruct((b, hw, cp), x_nchw.dtype),
        grid=(b, hw // tq, hw // tk),
        in_specs=[
            pl.BlockSpec((None, 2, cp), lambda bi, qi, ki: (bi, 0, 0)),     # stats
            pl.BlockSpec((None, tq, cp), lambda bi, qi, ki: (bi, qi, 0)),   # x (q rows)
            pl.BlockSpec((None, tk, cp), lambda bi, qi, ki: (bi, ki, 0)),   # x (kv rows)
            pl.BlockSpec(memory_space=pltpu.MemorySpace.VMEM),              # wq (folded+scaled)
            pl.BlockSpec(memory_space=pltpu.MemorySpace.VMEM),              # wk (folded)
            pl.BlockSpec(memory_space=pltpu.MemorySpace.VMEM),              # wv (folded)
            pl.BlockSpec(memory_space=pltpu.MemorySpace.VMEM),              # wp
            pl.BlockSpec(memory_space=pltpu.MemorySpace.VMEM),              # packed biases
        ],
        out_specs=pl.BlockSpec((None, tq, cp), lambda bi, qi, ki: (bi, qi, 0)),
        scratch_shapes=[
            pltpu.VMEM((tq, cp), jnp.bfloat16),   # q tile (computed once per q-tile)
            pltpu.VMEM((tq, 1), jnp.float32),     # running max
            pltpu.VMEM((tq, 1), jnp.float32),     # running sum
            pltpu.VMEM((tq, cp), jnp.float32),    # output accumulator
        ],
        compiler_params=pltpu.CompilerParams(
            dimension_semantics=("parallel", "parallel", "arbitrary"),
            vmem_limit_bytes=attn_vmem),
    )(stats, x_p, x_p, wq_b, wk_b, wv_b, wp_b, bias_pack)

    # [B, HW, Cp] -> slice padding -> [B, C, H, W]
    return jnp.transpose(out_p[:, :, :c], (0, 2, 1)).reshape(b, c, h, w)


# --------------------------------------------------------------------------- #
# Pure-JAX reference (mirrors the PyTorch forward) and parameter init
# --------------------------------------------------------------------------- #
def attention_block_ref(x, params):
    b, c, h, w = x.shape
    g = NUM_GROUPS
    xg = x.reshape(b, g, c // g, h, w)
    mu = xg.mean(axis=(2, 3, 4), keepdims=True)
    var = ((xg - mu) ** 2).mean(axis=(2, 3, 4), keepdims=True)
    xn = ((xg - mu) * jax.lax.rsqrt(var + EPS)).reshape(b, c, h, w)
    xn = xn * params["gamma"].reshape(1, c, 1, 1) + params["beta"].reshape(1, c, 1, 1)

    def conv1x1(t, wn, bn):
        return (jnp.einsum("bchw,oc->bohw", t, params[wn].reshape(c, c))
                + params[bn].reshape(1, c, 1, 1))

    q = conv1x1(xn, "wq", "bq").reshape(b, c, h * w).transpose(0, 2, 1)
    k = conv1x1(xn, "wk", "bk").reshape(b, c, h * w)
    v = conv1x1(xn, "wv", "bv").reshape(b, c, h * w).transpose(0, 2, 1)
    attn = jax.nn.softmax(jnp.einsum("bqc,bck->bqk", q, k) * c ** (-0.5), axis=-1)
    out = jnp.einsum("bqk,bkc->bqc", attn, v).transpose(0, 2, 1).reshape(b, c, h, w)
    return x + conv1x1(out, "wp", "bp")


def init_params(key, c):
    ks = jax.random.split(key, 10)
    std = 1.0 / math.sqrt(c)
    return {
        "gamma": 1.0 + 0.1 * jax.random.normal(ks[0], (c,), jnp.float32),
        "beta": 0.1 * jax.random.normal(ks[1], (c,), jnp.float32),
        "wq": jax.random.normal(ks[2], (c, c, 1, 1), jnp.float32) * std,
        "bq": jax.random.normal(ks[3], (c,), jnp.float32) * std,
        "wk": jax.random.normal(ks[4], (c, c, 1, 1), jnp.float32) * std,
        "bk": jax.random.normal(ks[5], (c,), jnp.float32) * std,
        "wv": jax.random.normal(ks[6], (c, c, 1, 1), jnp.float32) * std,
        "bv": jax.random.normal(ks[7], (c,), jnp.float32) * std,
        "wp": jax.random.normal(ks[8], (c, c, 1, 1), jnp.float32) * std,
        "bp": jax.random.normal(ks[9], (c,), jnp.float32) * std,
    }


if __name__ == "__main__":
    # GroupNorm(32, C) needs C % 32 == 0 -> C = 64; HW = 256 with tq = tk = ts = 64 so the
    # multi-tile online-softmax and stats-accumulation paths are actually exercised.
    B, C, H, W = 2, 64, 16, 16
    key = jax.random.PRNGKey(0)
    kx, kp = jax.random.split(key)
    x = jax.random.normal(kx, (B, C, H, W), jnp.float32)
    params = init_params(kp, C)

    y = attention_block(x, params, tq=64, tk=64, ts=64)
    jax.block_until_ready(y)
    assert y.shape == (B, C, H, W) and y.dtype == jnp.float32

    # Loose sanity check vs the f32 reference (kernel uses bf16 MXU operands with f32
    # accumulation and an approximate reciprocal, so the tolerance is coarse).
    y_ref = attention_block_ref(x, params)
    max_err = float(jnp.max(jnp.abs(y - y_ref)))
    assert max_err < 2e-1, f"kernel mismatch vs reference: max abs err {max_err}"
    print("KERNEL_OK")
</pallas_src>

<mosaic_0001>
module attributes {stable_mosaic.version = 11 : i64} {
  func.func @_gn_stats_kernel(%arg0: i32, %arg1: i32, %arg2: memref<1x64x128xf32, #tpu.memory_space<vmem>>, %arg3: memref<128x128xf32, #tpu.memory_space<vmem>>, %arg4: memref<1x2x128xf32, #tpu.memory_space<vmem>>, %arg5: memref<1x128xf32, #tpu.memory_space<vmem>>, %arg6: memref<1x128xf32, #tpu.memory_space<vmem>>) attributes {dimension_semantics = [#tpu.dimension_semantics<parallel>, #tpu.dimension_semantics<arbitrary>], iteration_bounds = array<i64: 2, 4>, scalar_prefetch = 0 : i64, scratch_operands = 2 : i64, tpu.core_type = #tpu.core_type<tc>, window_params = [{transform_indices = @transform_0, window_bounds = array<i64: 1, 64, 128>}, {pipeline_mode = #tpu.pipeline_mode<synchronous>, transform_indices = @transform_1, window_bounds = array<i64: 128, 128>}, {transform_indices = @transform_2, window_bounds = array<i64: 1, 2, 128>}]} {
    %c0_i32 = arith.constant 0 : i32
    %0 = arith.cmpi eq, %arg1, %c0_i32 : i32
    %1 = arith.extui %0 : i1 to i32
    %c0_i32_0 = arith.constant 0 : i32
    %2 = arith.cmpi ne, %1, %c0_i32_0 : i32
    scf.if %2 {
      %cst_13 = arith.constant 0.000000e+00 : f32
      %19 = vector.broadcast %cst_13 : f32 to vector<1x128xf32>
      %c0_14 = arith.constant 0 : index
      %c0_15 = arith.constant 0 : index
      %20 = vector.load %arg5[%c0_14, %c0_15] : memref<1x128xf32, #tpu.memory_space<vmem>>, vector<1x128xf32>
      tpu.vector_store %arg5[%c0_14, %c0_15], %19 {strides = array<i32>} : memref<1x128xf32, #tpu.memory_space<vmem>>, vector<1x128xf32>,
      %cst_16 = arith.constant 0.000000e+00 : f32
      %21 = vector.broadcast %cst_16 : f32 to vector<1x128xf32>
      %c0_17 = arith.constant 0 : index
      %c0_18 = arith.constant 0 : index
      %22 = vector.load %arg6[%c0_17, %c0_18] : memref<1x128xf32, #tpu.memory_space<vmem>>, vector<1x128xf32>
      tpu.vector_store %arg6[%c0_17, %c0_18], %21 {strides = array<i32>} : memref<1x128xf32, #tpu.memory_space<vmem>>, vector<1x128xf32>,
    } else {
    }
    %c0 = arith.constant 0 : index
    %c0_1 = arith.constant 0 : index
    %c0_2 = arith.constant 0 : index
    %3 = vector.load %arg2[%c0, %c0_1, %c0_2] : memref<1x64x128xf32, #tpu.memory_space<vmem>>, vector<1x64x128xf32>
    %4 = vector.shape_cast %3 : vector<1x64x128xf32> to vector<64x128xf32>
    %c0_3 = arith.constant 0 : index
    %c0_4 = arith.constant 0 : index
    %5 = vector.load %arg5[%c0_3, %c0_4] : memref<1x128xf32, #tpu.memory_space<vmem>>, vector<1x128xf32>
    %cst = arith.constant dense<0.000000e+00> : vector<128xf32>
    %6 = vector.multi_reduction <add>, %4, %cst [0] : vector<64x128xf32> to vector<128xf32>
    %7 = vector.shape_cast %6 : vector<128xf32> to vector<1x128xf32>
    %8 = arith.addf %5, %7 : vector<1x128xf32>
    %c0_5 = arith.constant 0 : index
    %c0_6 = arith.constant 0 : index
    %9 = vector.load %arg5[%c0_5, %c0_6] : memref<1x128xf32, #tpu.memory_space<vmem>>, vector<1x128xf32>
    tpu.vector_store %arg5[%c0_5, %c0_6], %8 {strides = array<i32>} : memref<1x128xf32, #tpu.memory_space<vmem>>, vector<1x128xf32>,
    %c0_7 = arith.constant 0 : index
    %c0_8 = arith.constant 0 : index
    %10 = vector.load %arg6[%c0_7, %c0_8] : memref<1x128xf32, #tpu.memory_space<vmem>>, vector<1x128xf32>
    %11 = arith.mulf %4, %4 : vector<64x128xf32>
    %cst_9 = arith.constant dense<0.000000e+00> : vector<128xf32>
    %12 = vector.multi_reduction <add>, %11, %cst_9 [0] : vector<64x128xf32> to vector<128xf32>
    %13 = vector.shape_cast %12 : vector<128xf32> to vector<1x128xf32>
    %14 = arith.addf %10, %13 : vector<1x128xf32>
    %c0_10 = arith.constant 0 : index
    %c0_11 = arith.constant 0 : index
    %15 = vector.load %arg6[%c0_10, %c0_11] : memref<1x128xf32, #tpu.memory_space<vmem>>, vector<1x128xf32>
    tpu.vector_store %arg6[%c0_10, %c0_11], %14 {strides = array<i32>} : memref<1x128xf32, #tpu.memory_space<vmem>>, vector<1x128xf32>,
    %c3_i32 = arith.constant 3 : i32
    %16 = arith.cmpi eq, %arg1, %c3_i32 : i32
    %17 = arith.extui %16 : i1 to i32
    %c0_i32_12 = arith.constant 0 : i32
    %18 = arith.cmpi ne, %17, %c0_i32_12 : i32
    scf.if %18 {
      %c0_13 = arith.constant 0 : index
      %c0_14 = arith.constant 0 : index
      %19 = vector.load %arg5[%c0_13, %c0_14] : memref<1x128xf32, #tpu.memory_space<vmem>>, vector<1x128xf32>
      %cst_15 = arith.constant 3.906250e-03 : f32
      %20 = vector.broadcast %cst_15 : f32 to vector<1x128xf32>
      %21 = arith.mulf %19, %20 : vector<1x128xf32>
      %c0_16 = arith.constant 0 : index
      %c0_17 = arith.constant 0 : index
      %22 = vector.load %arg6[%c0_16, %c0_17] : memref<1x128xf32, #tpu.memory_space<vmem>>, vector<1x128xf32>
      %cst_18 = arith.constant 3.906250e-03 : f32
      %23 = vector.broadcast %cst_18 : f32 to vector<1x128xf32>
      %24 = arith.mulf %22, %23 : vector<1x128xf32>
      %c0_19 = arith.constant 0 : index
      %c0_20 = arith.constant 0 : index
      %25 = vector.load %arg3[%c0_19, %c0_20] : memref<128x128xf32, #tpu.memory_space<vmem>>, vector<128x128xf32>
      %cst_21 = arith.constant dense<0.000000e+00> : vector<1x128xf32>
      %26 = tpu.matmul %21, %25, %cst_21 {dimension_numbers = #tpu.dot_dimension_numbers<[1], [0], [0], [1], [0, 0, 1, 1], [], []>} : vector<1x128xf32>, vector<128x128xf32>, vector<1x128xf32> -> vector<1x128xf32>
      %c0_22 = arith.constant 0 : index
      %c0_23 = arith.constant 0 : index
      %27 = vector.load %arg3[%c0_22, %c0_23] : memref<128x128xf32, #tpu.memory_space<vmem>>, vector<128x128xf32>
      %cst_24 = arith.constant dense<0.000000e+00> : vector<1x128xf32>
      %28 = tpu.matmul %24, %27, %cst_24 {dimension_numbers = #tpu.dot_dimension_numbers<[1], [0], [0], [1], [0, 0, 1, 1], [], []>} : vector<1x128xf32>, vector<128x128xf32>, vector<1x128xf32> -> vector<1x128xf32>
      %29 = arith.mulf %26, %26 : vector<1x128xf32>
      %30 = arith.subf %28, %29 : vector<1x128xf32>
      %cst_25 = arith.constant 0.000000e+00 : f32
      %31 = vector.broadcast %cst_25 : f32 to vector<1x128xf32>
      %32 = arith.maximumf %30, %31 : vector<1x128xf32>
      %c0_26 = arith.constant 0 : index
      %c0_27 = arith.constant 0 : index
      %c0_28 = arith.constant 0 : index
      %33 = vector.load %arg4[%c0_26, %c0_27, %c0_28] : memref<1x2x128xf32, #tpu.memory_space<vmem>>, vector<1x1x128xf32>
      %34 = vector.shape_cast %33 : vector<1x1x128xf32> to vector<1x128xf32>
      %35 = vector.shape_cast %26 : vector<1x128xf32> to vector<1x1x128xf32>
      tpu.vector_store %arg4[%c0_26, %c0_27, %c0_28], %35 {strides = array<i32>} : memref<1x2x128xf32, #tpu.memory_space<vmem>>, vector<1x1x128xf32>,
      %cst_29 = arith.constant 9.99999974E-6 : f32
      %36 = vector.broadcast %cst_29 : f32 to vector<1x128xf32>
      %37 = arith.addf %32, %36 : vector<1x128xf32>
      %38 = math.rsqrt %37 : vector<1x128xf32>
      %c0_30 = arith.constant 0 : index
      %c1 = arith.constant 1 : index
      %c0_31 = arith.constant 0 : index
      %39 = vector.load %arg4[%c0_30, %c1, %c0_31] : memref<1x2x128xf32, #tpu.memory_space<vmem>>, vector<1x1x128xf32>
      %40 = vector.shape_cast %39 : vector<1x1x128xf32> to vector<1x128xf32>
      %41 = vector.shape_cast %38 : vector<1x128xf32> to vector<1x1x128xf32>
      tpu.vector_store %arg4[%c0_30, %c1, %c0_31], %41 {strides = array<i32>} : memref<1x2x128xf32, #tpu.memory_space<vmem>>, vector<1x1x128xf32>,
    } else {
    }
    return
  }
  func.func @transform_0(%arg0: i32, %arg1: i32) -> (i32, i32, i32) {
    %c0_i32 = arith.constant 0 : i32
    %c0_i32_0 = arith.constant 0 : i32
    return %arg0, %arg1, %c0_i32 : i32, i32, i32
  }
  func.func @transform_1(%arg0: i32, %arg1: i32) -> (i32, i32) {
    %c0_i32 = arith.constant 0 : i32
    %c0_i32_0 = arith.constant 0 : i32
    %c0_i32_1 = arith.constant 0 : i32
    return %c0_i32, %c0_i32_0 : i32, i32
  }
  func.func @transform_2(%arg0: i32, %arg1: i32) -> (i32, i32, i32) {
    %c0_i32 = arith.constant 0 : i32
    %c0_i32_0 = arith.constant 0 : i32
    %c0_i32_1 = arith.constant 0 : i32
    return %arg0, %c0_i32, %c0_i32_0 : i32, i32, i32
  }
}

</mosaic_0001>

<llo_original>
// kernel: tpu_custom_call.1
$region0: #{tpu_custom_call.1}
  #allocation0 [shape = 'u32[]', space=smem, size = 0x4, offset = 0x4, fixed_abs, tag = 'smem constant byte address 0x4 - core index']
  #allocation1 [shape = 'u32[72,128]{1,0:T(1,128)}', space=vmem, size = 0x9000, scoped, tag = 'internal scratch']
  #allocation2 [shape = 'f32[1,128]{1,0:T(1,128)}', space=vmem, size = 0x200, scoped, tag = 'scratch operand']
  #allocation3 [shape = 'f32[1,128]{1,0:T(1,128)}', space=vmem, size = 0x200, scoped, tag = 'scratch operand']
  %s0 = inlined_call_operand.hbm [shape: f32[2,256,128], index: 0, kind: input, shape index: {}]
  %s1 = inlined_call_operand.hbm [shape: f32[128,128], index: 1, kind: input, shape index: {}]
  %s2 = inlined_call_operand.hbm [shape: f32[2,2,128], index: 2, kind: output, shape index: {}]
  %s3 = sld [smem:[#allocation0]]
  $region57: #{tpu_custom_call.1} parent=0
    _
  %s5 = ssub.s32 1, %s3
  %s6 = scalar_select 0, %s5, %s3
  $region1: #{tpu_custom_call.1} parent=0
    #allocation4 [shape = 'u8[65536]{0}', space=vmem, size = 0x10000, scoped, tag = 'input window, operand 0']
    #allocation5 [shape = 's32[2]{0}', space=sflag, size = 0x8, scoped, tag = 'scoped memory for tpu_custom_call.1']
    #allocation6 [shape = 's32[2]{0}', space=sflag, size = 0x8, scoped, tag = 'scoped memory for tpu_custom_call.1']
    #allocation7 [shape = 'u8[65536]{0}', space=vmem, size = 0x10000, scoped, tag = 'input window, operand 1, single buffered']
    #allocation8 [shape = 's32[1]{0}', space=sflag, size = 0x4, scoped, tag = 'scoped memory for tpu_custom_call.1']
    #allocation9 [shape = 'u8[2048]{0}', space=vmem, size = 0x800, scoped, tag = 'output window, operand 0']
    %7 = vsyncpa [#allocation5], 0
    %s8 = scalar_lea.sflag [#allocation5], 1
    %9 = vsyncpa %s8, 0
    %10 = vsyncpa [#allocation8], 0
    %11 = vsyncpa [#allocation6], 0
    %s12 = scalar_lea.sflag [#allocation6], 1
    %13 = vsyncpa %s12, 0
    loop: start=0, step=1, limit=10
    $region2: #{tpu_custom_call.1} parent=1 // loop_pre_header
      _
    $region3: #{tpu_custom_call.1} parent=1 // loop_header
      %s15 = sphi 0, %s19
      %p16 = scmp.ge.s32.totalorder %s15, 10
      %s22 = sphi 0, %s34
      %s23 = sphi 0, %s30
      %s24 = sphi 0, %s22
      %s25 = sphi 0, %s23
      %s26 = sphi 0, %s24
      %s27 = sphi 0, %s25
      %s39 = sphi 0, %s41
      %s42 = sphi 0, %s39
      %s43 = sphi 0, %s42
      %s59 = sphi 0, %s43
      %s63 = sphi 0, %s63
      %s65 = sphi 0, %s63
      %s66 = sphi 0, %s65
      %s80 = sphi 0, %s66
      %s86 = sphi 0, %s88
      %s89 = sphi 0, %s86
      %s90 = sphi 0, %s89
      %s106 = sphi 0, %s90
    $region4: #{tpu_custom_call.1} parent=1 // loop_header_branch
      %18 = sbr.rel (%p16) target = $region8
    $region5: #{tpu_custom_call.1} parent=1 // loop_body
      %s20 = ssub.s32 %s15, 1
      %s21 = ssub.s32 %s15, 2
      %s28 = sadd.s32 1, %s23
      %p29 = scmp.ge.s32.totalorder %s28, 4
      %s30 = scalar_select %p29, 0, %s28
      %s31 = sadd.s32 1, %s22
      %s32 = scalar_select %p29, %s31, %s22
      %p33 = scmp.ge.s32.totalorder %s32, 2
      %s34 = scalar_select %p33, 0, %s32
      %s35 = ssub.s32 %s22, %s34
      %s36 = ssub.s32 %s23, %s30
      %s37 = sor.u32 %s35, %s36
      %p38 = scmp.eq.s32.totalorder %s37, 0
      %s40 = sadd.s32 %s39, 1
      %s41 = scalar_select %p38, %s39, %s40
      %p44 = pneg %p38
      %p45 = scmp.eq.s32.totalorder %s15, 7
      %p46 = por %p44, %p45
      %p47 = scmp.ne.s32.totalorder %s39, %s42
      %p48 = scmp.eq.s32.totalorder %s15, 0
      %p49 = por %p47, %p48
      %p50 = scmp.ne.s32.totalorder %s39, %s42
      %p51 = scmp.eq.s32.totalorder %s20, 7
      %p52 = por %p50, %p51
      %p53 = scmp.ne.s32.totalorder %s42, %s43
      %p54 = scmp.eq.s32.totalorder %s20, 0
      %p55 = por %p53, %p54
      %p56 = scmp.ne.s32.totalorder %s42, %s43
      %p57 = scmp.eq.s32.totalorder %s21, 7
      %p58 = por %p56, %p57
      %p60 = scmp.ne.s32.totalorder %s43, %s59
      %p61 = scmp.eq.s32.totalorder %s21, 0
      %p62 = por %p60, %p61
      %s64 = sadd.s32 %s63, 1
      %p67 = scmp.eq.s32.totalorder %s15, 7
      %p68 = scmp.ne.s32.totalorder %s63, %s65
      %p69 = scmp.eq.s32.totalorder %s15, 0
      %p70 = por %p68, %p69
      %p71 = scmp.ne.s32.totalorder %s63, %s65
      %p72 = scmp.eq.s32.totalorder %s20, 7
      %p73 = por %p71, %p72
      %p74 = scmp.ne.s32.totalorder %s65, %s66
      %p75 = scmp.eq.s32.totalorder %s20, 0
      %p76 = por %p74, %p75
      %p77 = scmp.ne.s32.totalorder %s65, %s66
      %p78 = scmp.eq.s32.totalorder %s21, 7
      %p79 = por %p77, %p78
      %p81 = scmp.ne.s32.totalorder %s66, %s80
      %p82 = scmp.eq.s32.totalorder %s21, 0
      %p83 = por %p81, %p82
      %s84 = ssub.s32 %s22, %s34
      %p85 = scmp.eq.s32.totalorder %s84, 0
      %s87 = sadd.s32 %s86, 1
      %s88 = scalar_select %p85, %s86, %s87
      %p91 = pneg %p85
      %p92 = scmp.eq.s32.totalorder %s15, 7
      %p93 = por %p91, %p92
      %p94 = scmp.ne.s32.totalorder %s86, %s89
      %p95 = scmp.eq.s32.totalorder %s15, 0
      %p96 = por %p94, %p95
      %p97 = scmp.ne.s32.totalorder %s86, %s89
      %p98 = scmp.eq.s32.totalorder %s20, 7
      %p99 = por %p97, %p98
      %p100 = scmp.ne.s32.totalorder %s89, %s90
      %p101 = scmp.eq.s32.totalorder %s20, 0
      %p102 = por %p100, %p101
      %p103 = scmp.ne.s32.totalorder %s89, %s90
      %p104 = scmp.eq.s32.totalorder %s21, 7
      %p105 = por %p103, %p104
      %p107 = scmp.ne.s32.totalorder %s90, %s106
      %p108 = scmp.eq.s32.totalorder %s21, 0
      %p109 = por %p107, %p108
      %p110 = scmp.le.s32.totalorder 1, %s15
      %p111 = scmp.lt.s32.totalorder %s15, 9
      %p112 = pnand %p110, %p111
      %p113 = pneg %p112
      // Predicated region
      $region9: #{tpu_custom_call.1} parent=5 // pred_check
        _
      $region10: #{tpu_custom_call.1} parent=5 // pred_check_branch
        %115 = sbr.rel (%p112) target = $region12
      $region11: #{tpu_custom_call.1} parent=5 // pred_region
        %s116 = ssub.s32 %s15, 1
        // Predicated region
        $region13: #{tpu_custom_call.1} parent=11 // pred_check
          %p117 = pneg %p76
        $region14: #{tpu_custom_call.1} parent=11 // pred_check_branch
          %119 = sbr.rel (%p117) target = $region16
        $region15: #{tpu_custom_call.1} parent=11 // pred_region
          %121 = vsyncadd [#allocation8], 0
          %s122 = sshll.u32 %s1, 4
          %s123 = int_to_ptr.hbm [resolvable:$true] %s122
          %s124 = sshll.u32 [#allocation7], 4
          %s125 = int_to_ptr.vmem [resolvable:$true] %s124
          %130 = dma.hbm_to_vmem [thread:$0]  %s123, 2048, %s125, [#allocation8], 128, 128, 8
        $region16: #{tpu_custom_call.1} parent=11 // pred_fallthru
          _
      $region12: #{tpu_custom_call.1} parent=5 // pred_fallthru
        _
      %p131 = scmp.lt.s32.totalorder %s15, 8
      // Predicated region
      $region17: #{tpu_custom_call.1} parent=5 // pred_check
        %p132 = pneg %p131
      $region18: #{tpu_custom_call.1} parent=5 // pred_check_branch
        %134 = sbr.rel (%p132) target = $region20
      $region19: #{tpu_custom_call.1} parent=5 // pred_region
        // Predicated region
        $region21: #{tpu_custom_call.1} parent=19 // pred_check
          %p135 = pneg %p49
        $region22: #{tpu_custom_call.1} parent=19 // pred_check_branch
          %137 = sbr.rel (%p135) target = $region24
        $region23: #{tpu_custom_call.1} parent=19 // pred_region
          %s138 = sand.u32 %s39, 1
          %s139 = scalar_lea.sflag [#allocation5], %s138
          %s140 = sand.u32 %s39, 1
          %s141 = smul.addr %s140, 64
          %s142 = scalar_lea.vmem [#allocation4], %s141
          %s143 = smul.u32 8, %s23
          %145 = vsyncadd %s139, 0
          %s146 = smul.addr %s22, 32
          %s147 = sadd.s32 %s143, %s146
          %s148 = smul.addr %s147, 8
          %s149 = scalar_lea.hbm %s0, %s148
          %s150 = sshll.u32 %s149, 4
          %s151 = int_to_ptr.hbm [resolvable:$true] %s150
          %s152 = sshll.u32 %s142, 4
          %s153 = int_to_ptr.vmem [resolvable:$true] %s152
          %158 = dma.hbm_to_vmem [thread:$0]  %s151, 1024, %s153, %s139, 128, 128, 8
        $region24: #{tpu_custom_call.1} parent=19 // pred_fallthru
          _
      $region20: #{tpu_custom_call.1} parent=5 // pred_fallthru
        _
      %p159 = scmp.le.s32.totalorder 1, %s15
      %p160 = scmp.lt.s32.totalorder %s15, 9
      %p161 = pnand %p159, %p160
      %p162 = pneg %p161
      // Predicated region
      $region25: #{tpu_custom_call.1} parent=5 // pred_check
        _
      $region26: #{tpu_custom_call.1} parent=5 // pred_check_branch
        %164 = sbr.rel (%p161) target = $region28
      $region27: #{tpu_custom_call.1} parent=5 // pred_region
        %s165 = ssub.s32 %s15, 1
        %s166 = sand.u32 %s42, 1
        %s167 = scalar_lea.sflag [#allocation5], %s166
        %s168 = sand.u32 %s42, 1
        %s169 = smul.addr %s168, 64
        %s170 = scalar_lea.vmem [#allocation4], %s169
        // Predicated region
        $region29: #{tpu_custom_call.1} parent=27 // pred_check
          %p171 = pneg %p55
        $region30: #{tpu_custom_call.1} parent=27 // pred_check_branch
          %173 = sbr.rel (%p171) target = $region32
        $region31: #{tpu_custom_call.1} parent=27 // pred_region
          %175 = dma.done %s167, 1024
        $region32: #{tpu_custom_call.1} parent=27 // pred_fallthru
          _
        // Predicated region
        $region33: #{tpu_custom_call.1} parent=27 // pred_check
          %p176 = pneg %p76
        $region34: #{tpu_custom_call.1} parent=27 // pred_check_branch
          %178 = sbr.rel (%p176) target = $region36
        $region35: #{tpu_custom_call.1} parent=27 // pred_region
          %180 = dma.done [#allocation8], 2048
        $region36: #{tpu_custom_call.1} parent=27 // pred_fallthru
          _
        %s181 = sand.u32 %s42, 1
        %s182 = scalar_lea.sflag [#allocation5], %s181
        %s183 = sand.u32 %s42, 1
        %s184 = smul.addr %s183, 64
        %s185 = scalar_lea.vmem [#allocation4], %s184
        %p186 = pneg %p55
        %p187 = pneg %p52
        %p188 = pneg %p76
        %p189 = pneg %p73
        %p190 = pneg %p102
        %p191 = pneg %p99
        %s192 = sand.u32 %s89, 1
        %s193 = scalar_lea.sflag [#allocation6], %s192
        %s194 = sand.u32 %s89, 1
        %s195 = smul.addr %s194, 2
        %s196 = scalar_lea.vmem [#allocation9], %s195
        %s197 = smul.u32 8, %s25
        %p198 = scmp.eq.s32.totalorder %s25, 0
        // Predicated region
        $region37: #{tpu_custom_call.1} parent=27 // pred_check
          %p199 = pneg %p198
        $region38: #{tpu_custom_call.1} parent=27 // pred_check_branch
          %201 = sbr.rel (%p199) target = $region40
        $region39: #{tpu_custom_call.1} parent=27 // pred_region
          %202 = vst [vmem:[#allocation2] sm:$0x1] 0.0
          %203 = vst [vmem:[#allocation3] sm:$0x1] 0.0
        $region40: #{tpu_custom_call.1} parent=27 // pred_fallthru
          _
        %v204 = vld [vmem:[%s170] sm:$0xff]
        %v205 = vld [vmem:[%s170 + $0x8] sm:$0xff]
        %v206 = vld [vmem:[%s170 + $0x10] sm:$0xff]
        %v207 = vld [vmem:[%s170 + $0x18] sm:$0xff]
        %v208 = vld [vmem:[%s170 + $0x20] sm:$0xff]
        %v209 = vld [vmem:[%s170 + $0x28] sm:$0xff]
        %v210 = vld [vmem:[%s170 + $0x30] sm:$0xff]
        %v211 = vld [vmem:[%s170 + $0x38] sm:$0xff]
        %v212 = vld [vmem:[#allocation2] sm:$0x1]
        %v213 = vadd.f32 %v204, %v205
        %v214 = vadd.f32 %v213, %v206
        %v215 = vadd.f32 %v214, %v207
        %v216 = vadd.f32 %v215, %v208
        %v217 = vadd.f32 %v216, %v209
        %v218 = vadd.f32 %v217, %v210
        %v219 = vadd.f32 %v218, %v211
        %v220 = vrot.slane %v219, 4
        %v221 = vadd.f32 %v219, %v220
        %v222 = vrot.slane %v221, 2
        %v223 = vadd.f32 %v221, %v222
        %v224 = vrot.slane %v223, 1
        %v225 = vadd.f32 %v223, %v224
        %v226 = vadd.f32 %v212, %v225
        %227 = vst [vmem:[#allocation2] sm:$0x1] %v226
        %v228 = vld [vmem:[#allocation3] sm:$0x1]
        %v229 = vmul.f32 %v204, %v204
        %v230 = vmul.f32 %v205, %v205
        %v231 = vmul.f32 %v206, %v206
        %v232 = vmul.f32 %v207, %v207
        %v233 = vmul.f32 %v208, %v208
        %v234 = vmul.f32 %v209, %v209
        %v235 = vmul.f32 %v210, %v210
        %v236 = vmul.f32 %v211, %v211
        %v237 = vadd.f32 %v229, %v230
        %v238 = vadd.f32 %v237, %v231
        %v239 = vadd.f32 %v238, %v232
        %v240 = vadd.f32 %v239, %v233
        %v241 = vadd.f32 %v240, %v234
        %v242 = vadd.f32 %v241, %v235
        %v243 = vadd.f32 %v242, %v236
        %v244 = vrot.slane %v243, 4
        %v245 = vadd.f32 %v243, %v244
        %v246 = vrot.slane %v245, 2
        %v247 = vadd.f32 %v245, %v246
        %v248 = vrot.slane %v247, 1
        %v249 = vadd.f32 %v247, %v248
        %v250 = vadd.f32 %v228, %v249
        %251 = vst [vmem:[#allocation3] sm:$0x1] %v250
        %p252 = scmp.eq.s32.totalorder %s25, 3
        // Predicated region
        $region41: #{tpu_custom_call.1} parent=27 // pred_check
          %p253 = pneg %p252
        $region42: #{tpu_custom_call.1} parent=27 // pred_check_branch
          %255 = sbr.rel (%p253) target = $region44
        $region43: #{tpu_custom_call.1} parent=27 // pred_region
          %v256 = vld [vmem:[#allocation2] sm:$0x1]
          %v257 = vmul.f32 %v256, 0.00390625
          %v258 = vld [vmem:[#allocation3] sm:$0x1]
          %v259 = vmul.f32 %v258, 0.00390625
          %v260 = vld [vmem:[#allocation7] sm:$0xff]
          %v261 = vld [vmem:[#allocation7 + $0x8] sm:$0xff]
          %v262 = vld [vmem:[#allocation7 + $0x10] sm:$0xff]
          %v263 = vld [vmem:[#allocation7 + $0x18] sm:$0xff]
          %v264 = vld [vmem:[#allocation7 + $0x20] sm:$0xff]
          %v265 = vld [vmem:[#allocation7 + $0x28] sm:$0xff]
          %v266 = vld [vmem:[#allocation7 + $0x30] sm:$0xff]
          %v267 = vld [vmem:[#allocation7 + $0x38] sm:$0xff]
          %v268 = vld [vmem:[#allocation7 + $0x40] sm:$0xff]
          %v269 = vld [vmem:[#allocation7 + $0x48] sm:$0xff]
          %v270 = vld [vmem:[#allocation7 + $0x50] sm:$0xff]
          %v271 = vld [vmem:[#allocation7 + $0x58] sm:$0xff]
          %v272 = vld [vmem:[#allocation7 + $0x60] sm:$0xff]
          %v273 = vld [vmem:[#allocation7 + $0x68] sm:$0xff]
          %v274 = vld [vmem:[#allocation7 + $0x70] sm:$0xff]
          %v275 = vld [vmem:[#allocation7 + $0x78] sm:$0xff]
          %276 = vmatpush.msra.mxu0 %v275
          %277 = vmatpush.msra.mxu0 %v274
          %278 = vmatpush.msra.mxu0 %v273
          %279 = vmatpush.msra.mxu0 %v272
          %280 = vmatpush.msra.mxu0 %v271
          %281 = vmatpush.msra.mxu0 %v270
          %282 = vmatpush.msra.mxu0 %v269
          %283 = vmatpush.msra.mxu0 %v268
          %284 = vmatpush.msra.mxu0 %v267
          %285 = vmatpush.msra.mxu0 %v266
          %286 = vmatpush.msra.mxu0 %v265
          %287 = vmatpush.msra.mxu0 %v264
          %288 = vmatpush.msra.mxu0 %v263
          %289 = vmatpush.msra.mxu0 %v262
          %290 = vmatpush.msra.mxu0 %v261
          %291 = vmatpush.msra.mxu0 %v260
          %292 = vmatmul.f32.gmra.mxu0 %v257
          %v293 = vpop.f32.mrf.mxu0
          %v294 = vadd.f32 0.0, %v293
          %295 = vdwg.mxu0
          %296 = vmatpush.msra.mxu0 %v275
          %297 = vmatpush.msra.mxu0 %v274
          %298 = vmatpush.msra.mxu0 %v273
          %299 = vmatpush.msra.mxu0 %v272
          %300 = vmatpush.msra.mxu0 %v271
          %301 = vmatpush.msra.mxu0 %v270
          %302 = vmatpush.msra.mxu0 %v269
          %303 = vmatpush.msra.mxu0 %v268
          %304 = vmatpush.msra.mxu0 %v267
          %305 = vmatpush.msra.mxu0 %v266
          %306 = vmatpush.msra.mxu0 %v265
          %307 = vmatpush.msra.mxu0 %v264
          %308 = vmatpush.msra.mxu0 %v263
          %309 = vmatpush.msra.mxu0 %v262
          %310 = vmatpush.msra.mxu0 %v261
          %311 = vmatpush.msra.mxu0 %v260
          %312 = vmatmul.f32.gmra.mxu0 %v259
          %v313 = vpop.f32.mrf.mxu0
          %v314 = vadd.f32 0.0, %v313
          %315 = vdwg.mxu0
          %v316 = vmul.f32 %v294, %v294
          %v317 = vsub.f32 %v314, %v316
          %v318 = vmax.f32 %v317, 0.0
          %319 = vst [vmem:[%s196] sm:$0x1] %v294
          %v320 = vadd.f32 %v318, 1e-05
          %v321 = vrsqrt.pop %v320
          %v322 = vmul.f32 %v321, %v320
          %v323 = vmul.f32 %v322, %v321
          %v324 = vmul.f32 0.5, %v323
          %v325 = vsub.f32 1.5, %v324
          %v326 = vmul.f32 %v321, %v325
          %vm327 = vweird.f32 %v320
          %vm328 = vweird.f32 %v321
          %vm329 = vmor %vm327, %vm328
          %v330 = vsel %vm329, %v321, %v326
          %331 = vst [vmem:[%s196 + $0x1] sm:$0x1] %v330
        $region44: #{tpu_custom_call.1} parent=27 // pred_fallthru
          _
        %s332 = sand.u32 %s89, 1
        %s333 = scalar_lea.sflag [#allocation6], %s332
        %s334 = sand.u32 %s89, 1
        %s335 = smul.addr %s334, 2
        %s336 = scalar_lea.vmem [#allocation9], %s335
        // Predicated region
        $region45: #{tpu_custom_call.1} parent=27 // pred_check
          %p337 = pneg %p99
        $region46: #{tpu_custom_call.1} parent=27 // pred_check_branch
          %339 = sbr.rel (%p337) target = $region48
        $region47: #{tpu_custom_call.1} parent=27 // pred_region
          %341 = vsyncadd %s333, 0
          %s342 = smul.addr %s24, 2
          %s343 = scalar_lea.hbm %s2, %s342
          %s345 = sshll.u32 %s336, 4
          %s346 = int_to_ptr.vmem [resolvable:$true] %s345
          %s347 = sshll.u32 %s343, 4
          %s348 = int_to_ptr.hbm [resolvable:$true] %s347
          %350 = dma.vmem_to_hbm [thread:$0]  %s346, 32, %s348, %s333
        $region48: #{tpu_custom_call.1} parent=27 // pred_fallthru
          _
      $region28: #{tpu_custom_call.1} parent=5 // pred_fallthru
        _
      %p351 = scmp.le.s32.totalorder 2, %s15
      // Predicated region
      $region49: #{tpu_custom_call.1} parent=5 // pred_check
        %p352 = pneg %p351
      $region50: #{tpu_custom_call.1} parent=5 // pred_check_branch
        %354 = sbr.rel (%p352) target = $region52
      $region51: #{tpu_custom_call.1} parent=5 // pred_region
        %s355 = ssub.s32 %s15, 2
        // Predicated region
        $region53: #{tpu_custom_call.1} parent=51 // pred_check
          %p356 = pneg %p105
        $region54: #{tpu_custom_call.1} parent=51 // pred_check_branch
          %358 = sbr.rel (%p356) target = $region56
        $region55: #{tpu_custom_call.1} parent=51 // pred_region
          %s359 = sand.u32 %s90, 1
          %s360 = scalar_lea.sflag [#allocation6], %s359
          %s361 = sand.u32 %s90, 1
          %s362 = smul.addr %s361, 2
          %s363 = scalar_lea.vmem [#allocation9], %s362
          %365 = dma.done %s360, 32
        $region56: #{tpu_custom_call.1} parent=51 // pred_fallthru
          _
      $region52: #{tpu_custom_call.1} parent=5 // pred_fallthru
        _
    $region6: #{tpu_custom_call.1} parent=1 // loop_footer
      %s19 = sadd.s32 1, %s15
    $region7: #{tpu_custom_call.1} parent=1 // loop_footer_branch
      %14 = sbr.rel target = $region3
    $region8: #{tpu_custom_call.1} parent=1 // loop_exit
      _
    %366 = vsyncpa [#allocation5], 1
    %s367 = scalar_lea.sflag [#allocation5], 1
    %368 = vsyncpa %s367, 1
    %369 = vsyncpa [#allocation8], 1
    %370 = vsyncpa [#allocation6], 1
    %s371 = scalar_lea.sflag [#allocation6], 1
    %372 = vsyncpa %s371, 1

</llo_original>
